<compile_context>
chip_gen: v7x
topology: tpu7x:2x2x1
jax: 0.10.0
libtpu: 0.0.40
codegen_flags: <defaults>
</compile_context>

<pallas_src>
import jax
import jax.numpy as jnp
from jax.experimental import pallas as pl
from jax.experimental.pallas import tpu as pltpu

EMBEDDING_SIZE = 8
# Synthetic category cardinalities (len(dataset_full.labels[i]) is data-driven
# in the original script; fixed deterministically here).
NUM_EMBEDDINGS = [5, 10, 4, 7]
EMB_OFFSETS = [0, 5, 15, 19]            # exclusive cumsum of NUM_EMBEDDINGS
TOTAL_EMB = sum(NUM_EMBEDDINGS)         # 26

NUM_NUMERIC = 2
IN_FEATURES = NUM_NUMERIC + EMBEDDING_SIZE * 4   # 34
HIDDEN = 40
OUT_FEATURES = 2
OUT_PAD = 128                            # lane-dense padded output width
DEFAULT_TILE_B = 1024                    # ~3 MiB of double-buffered VMEM


def _round_up(n, m):
    return ((n + m - 1) // m) * m


def _fused_mlp_kernel(x_ref, idx_ref, w_emb_ref, w1n_ref, b1_ref,
                      w2_ref, b2_ref, w3_ref, b3_ref, o_ref):
    """Fused embedding-gather + Linear->ReLU->Linear->ReLU->Linear."""
    x = x_ref[...]                       # (TB, 2)  f32
    idx = idx_ref[...]                   # (TB, 4)  int32, already offset into
    tb = x.shape[0]                      #           the concatenated tables

    # Multi-hot over the row-concatenated embedding tables (4 ones per row).
    iota = jax.lax.broadcasted_iota(jnp.int32, (tb, TOTAL_EMB), 1)
    onehot = (iota == idx[:, 0:1]).astype(jnp.float32)
    for i in range(1, 4):
        onehot = onehot + (iota == idx[:, i:i + 1]).astype(jnp.float32)

    # Layer 1: gather + concat + Linear(34->40) folded into
    #   multi_hot @ (E_blockdiag @ W1[2:])  +  x_num "@" W1[:2]  + b1, ReLU.
    h1 = jnp.dot(onehot, w_emb_ref[...], preferred_element_type=jnp.float32)
    w1n = w1n_ref[...]                   # (2, 40)
    h1 = h1 + x[:, 0:1] * w1n[0:1, :] + x[:, 1:2] * w1n[1:2, :]
    h1 = jnp.maximum(h1 + b1_ref[...], 0.0)

    # Layer 2.
    h2 = jnp.dot(h1, w2_ref[...], preferred_element_type=jnp.float32) + b2_ref[...]
    h2 = jnp.maximum(h2, 0.0)

    # Layer 3 with 128-lane zero-padded weights -> unmasked lane-dense store.
    o_ref[...] = jnp.dot(h2, w3_ref[...], preferred_element_type=jnp.float32) + b3_ref[...]


def model_forward(params, x, x_classes, *, tile_b=DEFAULT_TILE_B):
    """Full forward pass. x: (B, 2) f32, x_classes: (B, 4) int. Returns (B, 2)."""
    B = x.shape[0]
    x = x.astype(jnp.float32)

    # Global indices into the row-concatenated embedding tables.
    offsets = jnp.asarray(EMB_OFFSETS, jnp.int32)            # (4,)
    idx_global = x_classes.astype(jnp.int32) + offsets[None, :]

    # Fold the block-diagonal embedding matrix into the first linear layer:
    #   concat(emb_0..emb_3) @ W1[2:]  ==  multi_hot @ (E_blockdiag @ W1[2:]).
    w1 = params["w1"]                                        # (34, 40)
    w1_num = w1[:NUM_NUMERIC]                                # (2, 40)
    w_emb_fused = jnp.zeros((TOTAL_EMB, HIDDEN), jnp.float32)
    for i in range(4):
        w1_blk = w1[NUM_NUMERIC + i * EMBEDDING_SIZE:
                    NUM_NUMERIC + (i + 1) * EMBEDDING_SIZE]  # (8, 40)
        w_emb_fused = w_emb_fused.at[
            EMB_OFFSETS[i]:EMB_OFFSETS[i] + NUM_EMBEDDINGS[i]
        ].set(params["embs"][i] @ w1_blk)

    # Zero-pad the last layer to 128 output lanes (lane-dense store).
    w3_pad = jnp.zeros((HIDDEN, OUT_PAD), jnp.float32).at[:, :OUT_FEATURES].set(params["w3"])
    b3_pad = jnp.zeros((1, OUT_PAD), jnp.float32).at[:, :OUT_FEATURES].set(params["b3"])

    # Batch tiling / padding (tile must be a multiple of 8 sublanes).
    tb = min(tile_b, _round_up(B, 8))
    b_pad = _round_up(B, tb)
    if b_pad != B:
        x = jnp.pad(x, ((0, b_pad - B), (0, 0)))
        idx_global = jnp.pad(idx_global, ((0, b_pad - B), (0, 0)))  # index 0 is valid
    grid = (b_pad // tb,)

    flops = 2 * b_pad * (TOTAL_EMB * HIDDEN + NUM_NUMERIC * HIDDEN
                         + HIDDEN * HIDDEN + HIDDEN * OUT_PAD)
    bytes_accessed = (b_pad * (NUM_NUMERIC + 4 + OUT_PAD) * 4
                      + (TOTAL_EMB * HIDDEN + NUM_NUMERIC * HIDDEN
                         + HIDDEN * HIDDEN + HIDDEN * OUT_PAD
                         + 2 * HIDDEN + OUT_PAD) * 4)

    out = pl.pallas_call(
        _fused_mlp_kernel,
        out_shape=jax.ShapeDtypeStruct((b_pad, OUT_PAD), jnp.float32),
        grid=grid,
        in_specs=[
            pl.BlockSpec((tb, NUM_NUMERIC), lambda i: (i, 0)),      # x numeric
            pl.BlockSpec((tb, 4), lambda i: (i, 0)),                # class idx
            pl.BlockSpec((TOTAL_EMB, HIDDEN), lambda i: (0, 0)),    # fused emb @ W1
            pl.BlockSpec((NUM_NUMERIC, HIDDEN), lambda i: (0, 0)),  # W1 numeric rows
            pl.BlockSpec((1, HIDDEN), lambda i: (0, 0)),            # b1
            pl.BlockSpec((HIDDEN, HIDDEN), lambda i: (0, 0)),       # W2
            pl.BlockSpec((1, HIDDEN), lambda i: (0, 0)),            # b2
            pl.BlockSpec((HIDDEN, OUT_PAD), lambda i: (0, 0)),      # W3 (padded)
            pl.BlockSpec((1, OUT_PAD), lambda i: (0, 0)),           # b3 (padded)
        ],
        out_specs=pl.BlockSpec((tb, OUT_PAD), lambda i: (i, 0)),
        compiler_params=pltpu.CompilerParams(
            dimension_semantics=("parallel",),
            vmem_limit_bytes=64 * 1024 * 1024,
        ),
        cost_estimate=pl.CostEstimate(
            flops=flops, transcendentals=0, bytes_accessed=bytes_accessed),
    )(x, idx_global, w_emb_fused, w1_num, params["b1"],
      params["w2"], params["b2"], w3_pad, b3_pad)

    return out[:B, :OUT_FEATURES]


def init_params(key):
    """Deterministic parameter init mirroring the torch module's shapes."""
    keys = jax.random.split(key, 16)
    params = {}

    def linear(kw, kb, fan_in, fan_out):
        lim = 1.0 / jnp.sqrt(fan_in)
        w = jax.random.uniform(kw, (fan_in, fan_out), jnp.float32, -lim, lim)
        b = jax.random.uniform(kb, (1, fan_out), jnp.float32, -lim, lim)
        return w, b

    # Weights stored (in, out) so forward is x @ W + b (== torch x @ W.T + b).
    params["w1"], params["b1"] = linear(keys[0], keys[1], IN_FEATURES, HIDDEN)
    params["w2"], params["b2"] = linear(keys[2], keys[3], HIDDEN, HIDDEN)
    params["w3"], params["b3"] = linear(keys[4], keys[5], HIDDEN, OUT_FEATURES)

    # Embedding tables (num_embeddings_i, EMBEDDING_SIZE), torch default ~N(0,1).
    params["embs"] = [
        jax.random.normal(keys[6 + i], (NUM_EMBEDDINGS[i], EMBEDDING_SIZE), jnp.float32)
        for i in range(4)
    ]
    return params


def reference_forward(params, x, x_classes):
    """Pure-JAX reference matching the PyTorch forward exactly."""
    x_enc = [jnp.take(params["embs"][i], x_classes[:, i], axis=0) for i in range(4)]
    h = jnp.concatenate([x] + x_enc, axis=-1)                # (B, 34)
    h = jnp.maximum(h @ params["w1"] + params["b1"], 0.0)
    h = jnp.maximum(h @ params["w2"] + params["b2"], 0.0)
    return h @ params["w3"] + params["b3"]


if __name__ == "__main__":
    key = jax.random.PRNGKey(0)
    k_param, k_x, k_cls = jax.random.split(key, 3)

    B = 8
    params = init_params(k_param)
    x = jax.random.normal(k_x, (B, 2), jnp.float32)
    cls_cols = [
        jax.random.randint(jax.random.fold_in(k_cls, i), (B, 1), 0, NUM_EMBEDDINGS[i])
        for i in range(4)
    ]
    x_classes = jnp.concatenate(cls_cols, axis=-1).astype(jnp.int32)  # (B, 4)

    y = model_forward(params, x, x_classes)
    y = jax.block_until_ready(y)

    y_ref = reference_forward(params, x, x_classes)
    assert y.shape == (B, OUT_FEATURES)
    assert jnp.allclose(y, y_ref, atol=1e-4, rtol=1e-4), float(jnp.max(jnp.abs(y - y_ref)))

    print("KERNEL_OK")
</pallas_src>

<mosaic_0001>
module attributes {stable_mosaic.version = 11 : i64} {
  func.func @_fused_mlp_kernel(%arg0: i32, %arg1: memref<8x2xf32, #tpu.memory_space<vmem>>, %arg2: memref<8x4xi32, #tpu.memory_space<vmem>>, %arg3: memref<26x40xf32, #tpu.memory_space<vmem>>, %arg4: memref<2x40xf32, #tpu.memory_space<vmem>>, %arg5: memref<1x40xf32, #tpu.memory_space<vmem>>, %arg6: memref<40x40xf32, #tpu.memory_space<vmem>>, %arg7: memref<1x40xf32, #tpu.memory_space<vmem>>, %arg8: memref<40x128xf32, #tpu.memory_space<vmem>>, %arg9: memref<1x128xf32, #tpu.memory_space<vmem>>, %arg10: memref<8x128xf32, #tpu.memory_space<vmem>>) attributes {dimension_semantics = [#tpu.dimension_semantics<parallel>], iteration_bounds = array<i64: 1>, scalar_prefetch = 0 : i64, scratch_operands = 0 : i64, tpu.core_type = #tpu.core_type<tc>, window_params = [{transform_indices = @transform_0, window_bounds = array<i64: 8, 2>}, {transform_indices = @transform_1, window_bounds = array<i64: 8, 4>}, {pipeline_mode = #tpu.pipeline_mode<synchronous>, transform_indices = @transform_2, window_bounds = array<i64: 26, 40>}, {pipeline_mode = #tpu.pipeline_mode<synchronous>, transform_indices = @transform_3, window_bounds = array<i64: 2, 40>}, {pipeline_mode = #tpu.pipeline_mode<synchronous>, transform_indices = @transform_4, window_bounds = array<i64: 1, 40>}, {pipeline_mode = #tpu.pipeline_mode<synchronous>, transform_indices = @transform_5, window_bounds = array<i64: 40, 40>}, {pipeline_mode = #tpu.pipeline_mode<synchronous>, transform_indices = @transform_6, window_bounds = array<i64: 1, 40>}, {pipeline_mode = #tpu.pipeline_mode<synchronous>, transform_indices = @transform_7, window_bounds = array<i64: 40, 128>}, {pipeline_mode = #tpu.pipeline_mode<synchronous>, transform_indices = @transform_8, window_bounds = array<i64: 1, 128>}, {transform_indices = @transform_9, window_bounds = array<i64: 8, 128>}]} {
    %c0 = arith.constant 0 : index
    %c0_0 = arith.constant 0 : index
    %0 = vector.load %arg1[%c0, %c0_0] : memref<8x2xf32, #tpu.memory_space<vmem>>, vector<8x2xf32>
    %c0_1 = arith.constant 0 : index
    %c0_2 = arith.constant 0 : index
    %1 = vector.load %arg2[%c0_1, %c0_2] : memref<8x4xi32, #tpu.memory_space<vmem>>, vector<8x4xi32>
    %2 = tpu.iota {dimensions = array<i32: 1>} : vector<8x26xi32>
    %3 = vector.extract_strided_slice %1 {offsets = [0, 0], sizes = [8, 1], strides = [1, 1]} : vector<8x4xi32> to vector<8x1xi32>
    %4 = vector.broadcast %3 : vector<8x1xi32> to vector<8x26xi32>
    %5 = arith.cmpi eq, %2, %4 : vector<8x26xi32>
    %6 = arith.extui %5 : vector<8x26xi1> to vector<8x26xi32>
    %7 = arith.sitofp %6 : vector<8x26xi32> to vector<8x26xf32>
    %8 = vector.extract_strided_slice %1 {offsets = [0, 1], sizes = [8, 1], strides = [1, 1]} : vector<8x4xi32> to vector<8x1xi32>
    %9 = vector.broadcast %8 : vector<8x1xi32> to vector<8x26xi32>
    %10 = arith.cmpi eq, %2, %9 : vector<8x26xi32>
    %11 = arith.extui %10 : vector<8x26xi1> to vector<8x26xi32>
    %12 = arith.sitofp %11 : vector<8x26xi32> to vector<8x26xf32>
    %13 = arith.addf %7, %12 : vector<8x26xf32>
    %14 = vector.extract_strided_slice %1 {offsets = [0, 2], sizes = [8, 1], strides = [1, 1]} : vector<8x4xi32> to vector<8x1xi32>
    %15 = vector.broadcast %14 : vector<8x1xi32> to vector<8x26xi32>
    %16 = arith.cmpi eq, %2, %15 : vector<8x26xi32>
    %17 = arith.extui %16 : vector<8x26xi1> to vector<8x26xi32>
    %18 = arith.sitofp %17 : vector<8x26xi32> to vector<8x26xf32>
    %19 = arith.addf %13, %18 : vector<8x26xf32>
    %20 = vector.extract_strided_slice %1 {offsets = [0, 3], sizes = [8, 1], strides = [1, 1]} : vector<8x4xi32> to vector<8x1xi32>
    %21 = vector.broadcast %20 : vector<8x1xi32> to vector<8x26xi32>
    %22 = arith.cmpi eq, %2, %21 : vector<8x26xi32>
    %23 = arith.extui %22 : vector<8x26xi1> to vector<8x26xi32>
    %24 = arith.sitofp %23 : vector<8x26xi32> to vector<8x26xf32>
    %25 = arith.addf %19, %24 : vector<8x26xf32>
    %c0_3 = arith.constant 0 : index
    %c0_4 = arith.constant 0 : index
    %26 = vector.load %arg3[%c0_3, %c0_4] : memref<26x40xf32, #tpu.memory_space<vmem>>, vector<26x40xf32>
    %cst = arith.constant dense<0.000000e+00> : vector<8x40xf32>
    %27 = tpu.matmul %25, %26, %cst {dimension_numbers = #tpu.dot_dimension_numbers<[1], [0], [0], [1], [0, 0, 1, 1], [], []>} : vector<8x26xf32>, vector<26x40xf32>, vector<8x40xf32> -> vector<8x40xf32>
    %c0_5 = arith.constant 0 : index
    %c0_6 = arith.constant 0 : index
    %28 = vector.load %arg4[%c0_5, %c0_6] : memref<2x40xf32, #tpu.memory_space<vmem>>, vector<2x40xf32>
    %29 = vector.extract_strided_slice %0 {offsets = [0, 0], sizes = [8, 1], strides = [1, 1]} : vector<8x2xf32> to vector<8x1xf32>
    %30 = vector.extract_strided_slice %28 {offsets = [0, 0], sizes = [1, 40], strides = [1, 1]} : vector<2x40xf32> to vector<1x40xf32>
    %31 = vector.broadcast %29 : vector<8x1xf32> to vector<8x40xf32>
    %32 = vector.broadcast %30 : vector<1x40xf32> to vector<8x40xf32>
    %33 = arith.mulf %31, %32 : vector<8x40xf32>
    %34 = arith.addf %27, %33 : vector<8x40xf32>
    %35 = vector.extract_strided_slice %0 {offsets = [0, 1], sizes = [8, 1], strides = [1, 1]} : vector<8x2xf32> to vector<8x1xf32>
    %36 = vector.extract_strided_slice %28 {offsets = [1, 0], sizes = [1, 40], strides = [1, 1]} : vector<2x40xf32> to vector<1x40xf32>
    %37 = vector.broadcast %35 : vector<8x1xf32> to vector<8x40xf32>
    %38 = vector.broadcast %36 : vector<1x40xf32> to vector<8x40xf32>
    %39 = arith.mulf %37, %38 : vector<8x40xf32>
    %40 = arith.addf %34, %39 : vector<8x40xf32>
    %c0_7 = arith.constant 0 : index
    %c0_8 = arith.constant 0 : index
    %41 = vector.load %arg5[%c0_7, %c0_8] : memref<1x40xf32, #tpu.memory_space<vmem>>, vector<1x40xf32>
    %42 = vector.broadcast %41 : vector<1x40xf32> to vector<8x40xf32>
    %43 = arith.addf %40, %42 : vector<8x40xf32>
    %cst_9 = arith.constant 0.000000e+00 : f32
    %44 = vector.broadcast %cst_9 : f32 to vector<8x40xf32>
    %45 = arith.maximumf %43, %44 : vector<8x40xf32>
    %c0_10 = arith.constant 0 : index
    %c0_11 = arith.constant 0 : index
    %46 = vector.load %arg6[%c0_10, %c0_11] : memref<40x40xf32, #tpu.memory_space<vmem>>, vector<40x40xf32>
    %cst_12 = arith.constant dense<0.000000e+00> : vector<8x40xf32>
    %47 = tpu.matmul %45, %46, %cst_12 {dimension_numbers = #tpu.dot_dimension_numbers<[1], [0], [0], [1], [0, 0, 1, 1], [], []>} : vector<8x40xf32>, vector<40x40xf32>, vector<8x40xf32> -> vector<8x40xf32>
    %c0_13 = arith.constant 0 : index
    %c0_14 = arith.constant 0 : index
    %48 = vector.load %arg7[%c0_13, %c0_14] : memref<1x40xf32, #tpu.memory_space<vmem>>, vector<1x40xf32>
    %49 = vector.broadcast %48 : vector<1x40xf32> to vector<8x40xf32>
    %50 = arith.addf %47, %49 : vector<8x40xf32>
    %cst_15 = arith.constant 0.000000e+00 : f32
    %51 = vector.broadcast %cst_15 : f32 to vector<8x40xf32>
    %52 = arith.maximumf %50, %51 : vector<8x40xf32>
    %c0_16 = arith.constant 0 : index
    %c0_17 = arith.constant 0 : index
    %53 = vector.load %arg8[%c0_16, %c0_17] : memref<40x128xf32, #tpu.memory_space<vmem>>, vector<40x128xf32>
    %cst_18 = arith.constant dense<0.000000e+00> : vector<8x128xf32>
    %54 = tpu.matmul %52, %53, %cst_18 {dimension_numbers = #tpu.dot_dimension_numbers<[1], [0], [0], [1], [0, 0, 1, 1], [], []>} : vector<8x40xf32>, vector<40x128xf32>, vector<8x128xf32> -> vector<8x128xf32>
    %c0_19 = arith.constant 0 : index
    %c0_20 = arith.constant 0 : index
    %55 = vector.load %arg9[%c0_19, %c0_20] : memref<1x128xf32, #tpu.memory_space<vmem>>, vector<1x128xf32>
    %56 = vector.broadcast %55 : vector<1x128xf32> to vector<8x128xf32>
    %57 = arith.addf %54, %56 : vector<8x128xf32>
    %c0_21 = arith.constant 0 : index
    %c0_22 = arith.constant 0 : index
    %58 = vector.load %arg10[%c0_21, %c0_22] : memref<8x128xf32, #tpu.memory_space<vmem>>, vector<8x128xf32>
    tpu.vector_store %arg10[%c0_21, %c0_22], %57 {strides = array<i32>} : memref<8x128xf32, #tpu.memory_space<vmem>>, vector<8x128xf32>,
    return
  }
  func.func @transform_0(%arg0: i32) -> (i32, i32) {
    %c0_i32 = arith.constant 0 : i32
    %c0_i32_0 = arith.constant 0 : i32
    return %arg0, %c0_i32 : i32, i32
  }
  func.func @transform_1(%arg0: i32) -> (i32, i32) {
    %c0_i32 = arith.constant 0 : i32
    %c0_i32_0 = arith.constant 0 : i32
    return %arg0, %c0_i32 : i32, i32
  }
  func.func @transform_2(%arg0: i32) -> (i32, i32) {
    %c0_i32 = arith.constant 0 : i32
    %c0_i32_0 = arith.constant 0 : i32
    %c0_i32_1 = arith.constant 0 : i32
    return %c0_i32, %c0_i32_0 : i32, i32
  }
  func.func @transform_3(%arg0: i32) -> (i32, i32) {
    %c0_i32 = arith.constant 0 : i32
    %c0_i32_0 = arith.constant 0 : i32
    %c0_i32_1 = arith.constant 0 : i32
    return %c0_i32, %c0_i32_0 : i32, i32
  }
  func.func @transform_4(%arg0: i32) -> (i32, i32) {
    %c0_i32 = arith.constant 0 : i32
    %c0_i32_0 = arith.constant 0 : i32
    %c0_i32_1 = arith.constant 0 : i32
    return %c0_i32, %c0_i32_0 : i32, i32
  }
  func.func @transform_5(%arg0: i32) -> (i32, i32) {
    %c0_i32 = arith.constant 0 : i32
    %c0_i32_0 = arith.constant 0 : i32
    %c0_i32_1 = arith.constant 0 : i32
    return %c0_i32, %c0_i32_0 : i32, i32
  }
  func.func @transform_6(%arg0: i32) -> (i32, i32) {
    %c0_i32 = arith.constant 0 : i32
    %c0_i32_0 = arith.constant 0 : i32
    %c0_i32_1 = arith.constant 0 : i32
    return %c0_i32, %c0_i32_0 : i32, i32
  }
  func.func @transform_7(%arg0: i32) -> (i32, i32) {
    %c0_i32 = arith.constant 0 : i32
    %c0_i32_0 = arith.constant 0 : i32
    %c0_i32_1 = arith.constant 0 : i32
    return %c0_i32, %c0_i32_0 : i32, i32
  }
  func.func @transform_8(%arg0: i32) -> (i32, i32) {
    %c0_i32 = arith.constant 0 : i32
    %c0_i32_0 = arith.constant 0 : i32
    %c0_i32_1 = arith.constant 0 : i32
    return %c0_i32, %c0_i32_0 : i32, i32
  }
  func.func @transform_9(%arg0: i32) -> (i32, i32) {
    %c0_i32 = arith.constant 0 : i32
    %c0_i32_0 = arith.constant 0 : i32
    return %arg0, %c0_i32 : i32, i32
  }
}

</mosaic_0001>

<llo_original>
// kernel: tpu_custom_call.1
$region0: #{tpu_custom_call.1}
  #allocation0 [shape = 'u32[]', space=smem, size = 0x4, offset = 0x4, fixed_abs, tag = 'smem constant byte address 0x4 - core index']
  #allocation1 [shape = 'u32[144,128]{1,0:T(1,128)}', space=vmem, size = 0x12000, scoped, tag = 'internal scratch']
  %s0 = inlined_call_operand.hbm [shape: f32[8,2], index: 0, kind: input, shape index: {}]
  %s1 = inlined_call_operand.hbm [shape: s32[8,4], index: 1, kind: input, shape index: {}]
  %s2 = inlined_call_operand.hbm [shape: f32[26,40], index: 2, kind: input, shape index: {}]
  %s3 = inlined_call_operand.hbm [shape: f32[2,40], index: 3, kind: input, shape index: {}]
  %s4 = inlined_call_operand.hbm [shape: f32[1,40], index: 4, kind: input, shape index: {}]
  %s5 = inlined_call_operand.hbm [shape: f32[40,40], index: 5, kind: input, shape index: {}]
  %s6 = inlined_call_operand.hbm [shape: f32[1,40], index: 6, kind: input, shape index: {}]
  %s7 = inlined_call_operand.hbm [shape: f32[40,128], index: 7, kind: input, shape index: {}]
  %s8 = inlined_call_operand.hbm [shape: f32[1,128], index: 8, kind: input, shape index: {}]
  %s9 = inlined_call_operand.hbm [shape: f32[8,128], index: 9, kind: output, shape index: {}]
  %s10 = sld [smem:[#allocation0]]
  $region82: #{tpu_custom_call.1} parent=0
    _
  %s12 = ssub.s32 1, %s10
  %s13 = scalar_select 0, %s12, %s10
  $region1: #{tpu_custom_call.1} parent=0
    #allocation2 [shape = 'u8[4096]{0}', space=vmem, size = 0x1000, scoped, tag = 'input window, operand 0, single buffered']
    #allocation3 [shape = 's32[1]{0}', space=sflag, size = 0x4, scoped, tag = 'scoped memory for tpu_custom_call.1']
    #allocation4 [shape = 's32[1]{0}', space=sflag, size = 0x4, scoped, tag = 'scoped memory for tpu_custom_call.1']
    #allocation5 [shape = 'u8[4096]{0}', space=vmem, size = 0x1000, scoped, tag = 'input window, operand 1, single buffered']
    #allocation6 [shape = 's32[1]{0}', space=sflag, size = 0x4, scoped, tag = 'scoped memory for tpu_custom_call.1']
    #allocation7 [shape = 'u8[16384]{0}', space=vmem, size = 0x4000, scoped, tag = 'input window, operand 2, single buffered']
    #allocation8 [shape = 'u8[1024]{0}', space=vmem, size = 0x400, scoped, tag = 'input window, operand 3, single buffered']
    #allocation9 [shape = 's32[1]{0}', space=sflag, size = 0x4, scoped, tag = 'scoped memory for tpu_custom_call.1']
    #allocation10 [shape = 'u8[512]{0}', space=vmem, size = 0x400, scoped, tag = 'input window, operand 4, single buffered']
    #allocation11 [shape = 'u8[20480]{0}', space=vmem, size = 0x5000, scoped, tag = 'input window, operand 5, single buffered']
    #allocation12 [shape = 's32[1]{0}', space=sflag, size = 0x4, scoped, tag = 'scoped memory for tpu_custom_call.1']
    #allocation13 [shape = 'u8[512]{0}', space=vmem, size = 0x400, scoped, tag = 'input window, operand 6, single buffered']
    #allocation14 [shape = 'u8[20480]{0}', space=vmem, size = 0x5000, scoped, tag = 'input window, operand 7, single buffered']
    #allocation15 [shape = 's32[1]{0}', space=sflag, size = 0x4, scoped, tag = 'scoped memory for tpu_custom_call.1']
    #allocation16 [shape = 'u8[512]{0}', space=vmem, size = 0x400, scoped, tag = 'input window, operand 8, single buffered']
    #allocation17 [shape = 'u8[4096]{0}', space=vmem, size = 0x1000, scoped, tag = 'output window, operand 0, single buffered']
    %14 = vsyncpa [#allocation3], 0
    %15 = vsyncpa [#allocation6], 0
    %16 = vsyncpa [#allocation9], 0
    %17 = vsyncpa [#allocation12], 0
    %18 = vsyncpa [#allocation15], 0
    %19 = vsyncpa [#allocation4], 0
    // Predicated region
    $region2: #{tpu_custom_call.1} parent=1 // pred_check
      _
    $region3: #{tpu_custom_call.1} parent=1 // pred_check_branch
      %21 = sbr.rel (0) target = $region5
    $region4: #{tpu_custom_call.1} parent=1 // pred_region
      %s23 = ssub.s32 128, 128
      %24 = vsyncadd [#allocation3], %s23
      %s26 = sshll.u32 [#allocation2], 4
      %s27 = int_to_ptr.vmem [resolvable:$true] %s26
      %29 = dma.hbm_to_vmem [thread:$0]  %s0, 128, %s27, [#allocation3]
    $region5: #{tpu_custom_call.1} parent=1 // pred_fallthru
      _
    // Predicated region
    $region6: #{tpu_custom_call.1} parent=1 // pred_check
      _
    $region7: #{tpu_custom_call.1} parent=1 // pred_check_branch
      %31 = sbr.rel (0) target = $region9
    $region8: #{tpu_custom_call.1} parent=1 // pred_region
      %s33 = ssub.s32 128, 128
      %34 = vsyncadd [#allocation6], %s33
      %s36 = sshll.u32 [#allocation5], 4
      %s37 = int_to_ptr.vmem [resolvable:$true] %s36
      %39 = dma.hbm_to_vmem [thread:$0]  %s1, 128, %s37, [#allocation6]
    $region9: #{tpu_custom_call.1} parent=1 // pred_fallthru
      _
    // Predicated region
    $region10: #{tpu_custom_call.1} parent=1 // pred_check
      _
    $region11: #{tpu_custom_call.1} parent=1 // pred_check_branch
      %41 = sbr.rel (0) target = $region13
    $region12: #{tpu_custom_call.1} parent=1 // pred_region
      %s43 = ssub.s32 512, 512
      %44 = vsyncadd [#allocation6], %s43
      %s45 = sshll.u32 [#allocation7], 4
      %s46 = int_to_ptr.vmem [resolvable:$true] %s45
      %51 = dma.hbm_to_vmem [thread:$0]  %s2, 512, %s46, [#allocation6], 128, 128, 8
    $region13: #{tpu_custom_call.1} parent=1 // pred_fallthru
      _
    // Predicated region
    $region14: #{tpu_custom_call.1} parent=1 // pred_check
      _
    $region15: #{tpu_custom_call.1} parent=1 // pred_check_branch
      %53 = sbr.rel (0) target = $region17
    $region16: #{tpu_custom_call.1} parent=1 // pred_region
      %s55 = ssub.s32 32, 32
      %56 = vsyncadd [#allocation9], %s55
      %s58 = sshll.u32 [#allocation8], 4
      %s59 = int_to_ptr.vmem [resolvable:$true] %s58
      %61 = dma.hbm_to_vmem [thread:$0]  %s3, 32, %s59, [#allocation9]
    $region17: #{tpu_custom_call.1} parent=1 // pred_fallthru
      _
    // Predicated region
    $region18: #{tpu_custom_call.1} parent=1 // pred_check
      _
    $region19: #{tpu_custom_call.1} parent=1 // pred_check_branch
      %63 = sbr.rel (0) target = $region21
    $region20: #{tpu_custom_call.1} parent=1 // pred_region
      %s65 = ssub.s32 16, 16
      %66 = vsyncadd [#allocation9], %s65
      %s68 = sshll.u32 [#allocation10], 4
      %s69 = int_to_ptr.vmem [resolvable:$true] %s68
      %71 = dma.hbm_to_vmem [thread:$0]  %s4, 16, %s69, [#allocation9]
    $region21: #{tpu_custom_call.1} parent=1 // pred_fallthru
      _
    // Predicated region
    $region22: #{tpu_custom_call.1} parent=1 // pred_check
      _
    $region23: #{tpu_custom_call.1} parent=1 // pred_check_branch
      %73 = sbr.rel (0) target = $region25
    $region24: #{tpu_custom_call.1} parent=1 // pred_region
      %s75 = ssub.s32 640, 640
      %76 = vsyncadd [#allocation12], %s75
      %s77 = sshll.u32 [#allocation11], 4
      %s78 = int_to_ptr.vmem [resolvable:$true] %s77
      %83 = dma.hbm_to_vmem [thread:$0]  %s5, 640, %s78, [#allocation12], 128, 128, 8
    $region25: #{tpu_custom_call.1} parent=1 // pred_fallthru
      _
    // Predicated region
    $region26: #{tpu_custom_call.1} parent=1 // pred_check
      _
    $region27: #{tpu_custom_call.1} parent=1 // pred_check_branch
      %85 = sbr.rel (0) target = $region29
    $region28: #{tpu_custom_call.1} parent=1 // pred_region
      %s87 = ssub.s32 16, 16
      %88 = vsyncadd [#allocation12], %s87
      %s90 = sshll.u32 [#allocation13], 4
      %s91 = int_to_ptr.vmem [resolvable:$true] %s90
      %93 = dma.hbm_to_vmem [thread:$0]  %s6, 16, %s91, [#allocation12]
    $region29: #{tpu_custom_call.1} parent=1 // pred_fallthru
      _
    // Predicated region
    $region30: #{tpu_custom_call.1} parent=1 // pred_check
      _
    $region31: #{tpu_custom_call.1} parent=1 // pred_check_branch
      %95 = sbr.rel (0) target = $region33
    $region32: #{tpu_custom_call.1} parent=1 // pred_region
      %s97 = ssub.s32 640, 640
      %98 = vsyncadd [#allocation15], %s97
      %s99 = sshll.u32 [#allocation14], 4
      %s100 = int_to_ptr.vmem [resolvable:$true] %s99
      %105 = dma.hbm_to_vmem [thread:$0]  %s7, 640, %s100, [#allocation15], 128, 128, 8
    $region33: #{tpu_custom_call.1} parent=1 // pred_fallthru
      _
    // Predicated region
    $region34: #{tpu_custom_call.1} parent=1 // pred_check
      _
    $region35: #{tpu_custom_call.1} parent=1 // pred_check_branch
      %107 = sbr.rel (0) target = $region37
    $region36: #{tpu_custom_call.1} parent=1 // pred_region
      %s109 = ssub.s32 16, 16
      %110 = vsyncadd [#allocation15], %s109
      %s112 = sshll.u32 [#allocation16], 4
      %s113 = int_to_ptr.vmem [resolvable:$true] %s112
      %115 = dma.hbm_to_vmem [thread:$0]  %s8, 16, %s113, [#allocation15]
    $region37: #{tpu_custom_call.1} parent=1 // pred_fallthru
      _
    // Predicated region
    $region38: #{tpu_custom_call.1} parent=1 // pred_check
      _
    $region39: #{tpu_custom_call.1} parent=1 // pred_check_branch
      %117 = sbr.rel (0) target = $region41
    $region40: #{tpu_custom_call.1} parent=1 // pred_region
      %118 = dma.done [#allocation3], 128
    $region41: #{tpu_custom_call.1} parent=1 // pred_fallthru
      _
    // Predicated region
    $region42: #{tpu_custom_call.1} parent=1 // pred_check
      _
    $region43: #{tpu_custom_call.1} parent=1 // pred_check_branch
      %120 = sbr.rel (0) target = $region45
    $region44: #{tpu_custom_call.1} parent=1 // pred_region
      %121 = dma.done [#allocation6], 128
    $region45: #{tpu_custom_call.1} parent=1 // pred_fallthru
      _
    // Predicated region
    $region46: #{tpu_custom_call.1} parent=1 // pred_check
      _
    $region47: #{tpu_custom_call.1} parent=1 // pred_check_branch
      %123 = sbr.rel (0) target = $region49
    $region48: #{tpu_custom_call.1} parent=1 // pred_region
      %124 = dma.done [#allocation6], 512
    $region49: #{tpu_custom_call.1} parent=1 // pred_fallthru
      _
    // Predicated region
    $region50: #{tpu_custom_call.1} parent=1 // pred_check
      _
    $region51: #{tpu_custom_call.1} parent=1 // pred_check_branch
      %126 = sbr.rel (0) target = $region53
    $region52: #{tpu_custom_call.1} parent=1 // pred_region
      %127 = dma.done [#allocation9], 32
    $region53: #{tpu_custom_call.1} parent=1 // pred_fallthru
      _
    // Predicated region
    $region54: #{tpu_custom_call.1} parent=1 // pred_check
      _
    $region55: #{tpu_custom_call.1} parent=1 // pred_check_branch
      %129 = sbr.rel (0) target = $region57
    $region56: #{tpu_custom_call.1} parent=1 // pred_region
      %130 = dma.done [#allocation9], 16
    $region57: #{tpu_custom_call.1} parent=1 // pred_fallthru
      _
    // Predicated region
    $region58: #{tpu_custom_call.1} parent=1 // pred_check
      _
    $region59: #{tpu_custom_call.1} parent=1 // pred_check_branch
      %132 = sbr.rel (0) target = $region61
    $region60: #{tpu_custom_call.1} parent=1 // pred_region
      %133 = dma.done [#allocation12], 640
    $region61: #{tpu_custom_call.1} parent=1 // pred_fallthru
      _
    // Predicated region
    $region62: #{tpu_custom_call.1} parent=1 // pred_check
      _
    $region63: #{tpu_custom_call.1} parent=1 // pred_check_branch
      %135 = sbr.rel (0) target = $region65
    $region64: #{tpu_custom_call.1} parent=1 // pred_region
      %136 = dma.done [#allocation12], 16
    $region65: #{tpu_custom_call.1} parent=1 // pred_fallthru
      _
    // Predicated region
    $region66: #{tpu_custom_call.1} parent=1 // pred_check
      _
    $region67: #{tpu_custom_call.1} parent=1 // pred_check_branch
      %138 = sbr.rel (0) target = $region69
    $region68: #{tpu_custom_call.1} parent=1 // pred_region
      %139 = dma.done [#allocation15], 640
    $region69: #{tpu_custom_call.1} parent=1 // pred_fallthru
      _
    // Predicated region
    $region70: #{tpu_custom_call.1} parent=1 // pred_check
      _
    $region71: #{tpu_custom_call.1} parent=1 // pred_check_branch
      %141 = sbr.rel (0) target = $region73
    $region72: #{tpu_custom_call.1} parent=1 // pred_region
      %142 = dma.done [#allocation15], 16
    $region73: #{tpu_custom_call.1} parent=1 // pred_fallthru
      _
    %v143 = vld [vmem:[#allocation2] sm:$0xff]
    %v144 = vld [vmem:[#allocation5] sm:$0xff]
    %v145 = vlaneseq
    %v146 = vand.u32 %v145, 127
    %147 = vset.pattern.permute.xlu0 0
    %148 = vperm.xlu0 %147, %v144
    %v149 = vpop.permute.xlu0 %148
    %vm150 = vcmp.eq.s32.totalorder %v146, %v149
    %v151 = vsel %vm150, 1, 0
    %v152 = vcvt.s32.f32 %v151
    %153 = vset.pattern.permute.xlu0 1
    %154 = vperm.xlu0 %153, %v144
    %v155 = vpop.permute.xlu0 %154
    %vm156 = vcmp.eq.s32.totalorder %v146, %v155
    %v157 = vsel %vm156, 1, 0
    %v158 = vcvt.s32.f32 %v157
    %v159 = vadd.f32 %v152, %v158
    %160 = vset.pattern.permute.xlu0 2
    %161 = vperm.xlu0 %160, %v144
    %v162 = vpop.permute.xlu0 %161
    %vm163 = vcmp.eq.s32.totalorder %v146, %v162
    %v164 = vsel %vm163, 1, 0
    %v165 = vcvt.s32.f32 %v164
    %v166 = vadd.f32 %v159, %v165
    %167 = vset.pattern.permute.xlu0 3
    %168 = vperm.xlu0 %167, %v144
    %v169 = vpop.permute.xlu0 %168
    %vm170 = vcmp.eq.s32.totalorder %v146, %v169
    %v171 = vsel %vm170, 1, 0
    %v172 = vcvt.s32.f32 %v171
    %v173 = vadd.f32 %v166, %v172
    %v174 = vld [vmem:[#allocation7] sm:$0xff]
    %v175 = vld [vmem:[#allocation7 + $0x8] sm:$0xff]
    %v176 = vld [vmem:[#allocation7 + $0x10] sm:$0xff]
    %v177 = vld [vmem:[#allocation7 + $0x18] sm:$0x3]
    %v178 = vld [vmem:[#allocation8] sm:$0x3]
    %180 = vset.pattern.permute.xlu0 0
    %181 = vperm.xlu0 %180, %v143
    %v182 = vpop.permute.xlu0 %181
    %v184 = vlaneseq
    %v185 = vshrl.u32 %v184, 7
    %v186 = vsub.s32 0, %v185
    %v187 = vrot.slane %v178, %v186
    %v188 = vmul.f32 %v182, %v187
    %vm189 = vcmask 211968
    %v191 = vsel %vm189, %v173, 0
    %vm193 = vcmask 1041408
    %v195 = vsel %vm193, %v177, 0
    %197 = vmatprep.subr.mxu0 0.0
    %198 = vmatpush1.msra.mxu0 %v174
    %199 = vmatprep.subr.mxu0 0.0
    %200 = vmatpush1.msra.mxu0 %v175
    %201 = vmatprep.subr.mxu0 0.0
    %202 = vmatpush1.msra.mxu0 %v176
    %203 = vmatprep.subr.mxu0 0.0
    %204 = vmatpush1.msra.mxu0 %v195
    %205 = vmatprep.subr.mxu0 0.0
    %206 = vmatpush1.msra.mxu0 0.0
    %207 = vmatprep.subr.mxu0 0.0
    %208 = vmatpush1.msra.mxu0 0.0
    %209 = vmatprep.subr.mxu0 0.0
    %210 = vmatpush1.msra.mxu0 0.0
    %211 = vmatprep.subr.mxu0 0.0
    %212 = vmatpush1.msra.mxu0 0.0
    %213 = vmatprep.subr.mxu0 0.0
    %214 = vmatpush1.msra.mxu0 0.0
    %215 = vmatprep.subr.mxu0 0.0
    %216 = vmatpush1.msra.mxu0 0.0
    %217 = vmatprep.subr.mxu0 0.0
    %218 = vmatpush1.msra.mxu0 0.0
    %219 = vmatprep.subr.mxu0 0.0
    %220 = vmatpush1.msra.mxu0 0.0
    %221 = vmatprep.subr.mxu0 0.0
    %222 = vmatpush1.msra.mxu0 0.0
    %223 = vmatprep.subr.mxu0 0.0
    %224 = vmatpush1.msra.mxu0 0.0
    %225 = vmatprep.subr.mxu0 0.0
    %226 = vmatpush1.msra.mxu0 0.0
    %227 = vmatprep.subr.mxu0 0.0
    %228 = vmatpush1.msra.mxu0 0.0
    %229 = vmatprep.subr.mxu0 0.0
    %230 = vmatpush1.msra.mxu0 0.0
    %231 = vmatprep.subr.mxu0 0.0
    %232 = vmatpush1.msra.mxu0 0.0
    %233 = vmatprep.subr.mxu0 0.0
    %234 = vmatpush1.msra.mxu0 0.0
    %235 = vmatprep.subr.mxu0 0.0
    %236 = vmatpush1.msra.mxu0 0.0
    %237 = vmatprep.subr.mxu0 0.0
    %238 = vmatpush1.msra.mxu0 0.0
    %239 = vmatprep.subr.mxu0 0.0
    %240 = vmatpush1.msra.mxu0 0.0
    %241 = vmatprep.subr.mxu0 0.0
    %242 = vmatpush1.msra.mxu0 0.0
    %243 = vmatprep.subr.mxu0 0.0
    %244 = vmatpush1.msra.mxu0 0.0
    %245 = vmatprep.subr.mxu0 0.0
    %246 = vmatpush1.msra.mxu0 0.0
    %247 = vmatprep.subr.mxu0 0.0
    %248 = vmatpush1.msra.mxu0 0.0
    %249 = vmatprep.subr.mxu0 0.0
    %250 = vmatpush1.msra.mxu0 0.0
    %251 = vmatprep.subr.mxu0 0.0
    %252 = vmatpush1.msra.mxu0 0.0
    %253 = vmatprep.subr.mxu0 0.0
    %254 = vmatpush1.msra.mxu0 0.0
    %255 = vmatprep.subr.mxu0 0.0
    %256 = vmatpush1.msra.mxu0 0.0
    %257 = vmatprep.subr.mxu0 0.0
    %258 = vmatpush1.msra.mxu0 0.0
    %259 = vmatprep.subr.mxu0 0.0
    %260 = vmatpush1.msra.mxu0 0.0
    %261 = vmatprep.mubr.f32.mxu0 0.0
    %262 = vmatmul.mubr.f32.gmra.mrb[0].mxu0 %v191
    %v263 = vpop.f32.mrb[0].mxu0
    %v264 = vadd.f32 %v188, %v263
    %v265 = vpop.f32.mrb[0].mxu0
    %266 = vdwg.mxu0
    %267 = vset.pattern.permute.xlu0 1
    %268 = vperm.xlu0 %267, %v143
    %v269 = vpop.permute.xlu0 %268
    %v271 = vlaneseq
    %v272 = vshrl.u32 %v271, 7
    %v273 = vsub.s32 1, %v272
    %v274 = vrot.slane %v178, %v273
    %v275 = vmul.f32 %v269, %v274
    %v276 = vadd.f32 %v264, %v275
    %v277 = vld [vmem:[#allocation10] sm:$0x1]
    %v279 = vlaneseq
    %v280 = vshrl.u32 %v279, 7
    %v281 = vsub.s32 0, %v280
    %v282 = vrot.slane %v277, %v281
    %v284 = vadd.f32 %v276, %v282
    %v285 = vmax.f32 %v284, 0.0
    %v286 = vld [vmem:[#allocation11] sm:$0xff]
    %v287 = vld [vmem:[#allocation11 + $0x8] sm:$0xff]
    %v288 = vld [vmem:[#allocation11 + $0x10] sm:$0xff]
    %v289 = vld [vmem:[#allocation11 + $0x18] sm:$0xff]
    %v290 = vld [vmem:[#allocation11 + $0x20] sm:$0xff]
    %v291 = vld [vmem:[#allocation13] sm:$0x1]
    %v293 = vlaneseq
    %v294 = vshrl.u32 %v293, 7
    %v295 = vsub.s32 0, %v294
    %v296 = vrot.slane %v291, %v295
    %vm298 = vcmask 326656
    %v300 = vsel %vm298, %v285, 0
    %302 = vmatprep.subr.mxu0 0.0
    %303 = vmatpush1.msra.mxu0 %v286
    %304 = vmatprep.subr.mxu0 0.0
    %305 = vmatpush1.msra.mxu0 %v287
    %306 = vmatprep.subr.mxu0 0.0
    %307 = vmatpush1.msra.mxu0 %v288
    %308 = vmatprep.subr.mxu0 0.0
    %309 = vmatpush1.msra.mxu0 %v289
    %310 = vmatprep.subr.mxu0 0.0
    %311 = vmatpush1.msra.mxu0 %v290
    %312 = vmatprep.subr.mxu0 0.0
    %313 = vmatpush1.msra.mxu0 0.0
    %314 = vmatprep.subr.mxu0 0.0
    %315 = vmatpush1.msra.mxu0 0.0
    %316 = vmatprep.subr.mxu0 0.0
    %317 = vmatpush1.msra.mxu0 0.0
    %318 = vmatprep.subr.mxu0 0.0
    %319 = vmatpush1.msra.mxu0 0.0
    %320 = vmatprep.subr.mxu0 0.0
    %321 = vmatpush1.msra.mxu0 0.0
    %322 = vmatprep.subr.mxu0 0.0
    %323 = vmatpush1.msra.mxu0 0.0
    %324 = vmatprep.subr.mxu0 0.0
    %325 = vmatpush1.msra.mxu0 0.0
    %326 = vmatprep.subr.mxu0 0.0
    %327 = vmatpush1.msra.mxu0 0.0
    %328 = vmatprep.subr.mxu0 0.0
    %329 = vmatpush1.msra.mxu0 0.0
    %330 = vmatprep.subr.mxu0 0.0
    %331 = vmatpush1.msra.mxu0 0.0
    %332 = vmatprep.subr.mxu0 0.0
    %333 = vmatpush1.msra.mxu0 0.0
    %334 = vmatprep.subr.mxu0 0.0
    %335 = vmatpush1.msra.mxu0 0.0
    %336 = vmatprep.subr.mxu0 0.0
    %337 = vmatpush1.msra.mxu0 0.0
    %338 = vmatprep.subr.mxu0 0.0
    %339 = vmatpush1.msra.mxu0 0.0
    %340 = vmatprep.subr.mxu0 0.0
    %341 = vmatpush1.msra.mxu0 0.0
    %342 = vmatprep.subr.mxu0 0.0
    %343 = vmatpush1.msra.mxu0 0.0
    %344 = vmatprep.subr.mxu0 0.0
    %345 = vmatpush1.msra.mxu0 0.0
    %346 = vmatprep.subr.mxu0 0.0
    %347 = vmatpush1.msra.mxu0 0.0
    %348 = vmatprep.subr.mxu0 0.0
    %349 = vmatpush1.msra.mxu0 0.0
    %350 = vmatprep.subr.mxu0 0.0
    %351 = vmatpush1.msra.mxu0 0.0
    %352 = vmatprep.subr.mxu0 0.0
    %353 = vmatpush1.msra.mxu0 0.0
    %354 = vmatprep.subr.mxu0 0.0
    %355 = vmatpush1.msra.mxu0 0.0
    %356 = vmatprep.subr.mxu0 0.0
    %357 = vmatpush1.msra.mxu0 0.0
    %358 = vmatprep.subr.mxu0 0.0
    %359 = vmatpush1.msra.mxu0 0.0
    %360 = vmatprep.subr.mxu0 0.0
    %361 = vmatpush1.msra.mxu0 0.0
    %362 = vmatprep.subr.mxu0 0.0
    %363 = vmatpush1.msra.mxu0 0.0
    %364 = vmatprep.subr.mxu0 0.0
    %365 = vmatpush1.msra.mxu0 0.0
    %366 = vmatprep.mubr.f32.mxu0 0.0
    %367 = vmatmul.mubr.f32.gmra.mrb[0].mxu0 %v300
    %v368 = vpop.f32.mrb[0].mxu0
    %v369 = vadd.f32 %v296, %v368
    %v370 = vpop.f32.mrb[0].mxu0
    %371 = vdwg.mxu0
    %v372 = vmax.f32 %v369, 0.0
    %v373 = vld [vmem:[#allocation14] sm:$0xff]
    %v374 = vld [vmem:[#allocation14 + $0x8] sm:$0xff]
    %v375 = vld [vmem:[#allocation14 + $0x10] sm:$0xff]
    %v376 = vld [vmem:[#allocation14 + $0x18] sm:$0xff]
    %v377 = vld [vmem:[#allocation14 + $0x20] sm:$0xff]
    %v378 = vld [vmem:[#allocation16] sm:$0x1]
    %v380 = vlaneseq
    %v381 = vshrl.u32 %v380, 7
    %v382 = vsub.s32 0, %v381
    %v383 = vrot.slane %v378, %v382
    %v386 = vsel %vm298, %v372, 0
    %388 = vmatprep.subr.mxu0 0.0
    %389 = vmatpush1.msra.mxu0 %v373
    %390 = vmatprep.subr.mxu0 0.0
    %391 = vmatpush1.msra.mxu0 %v374
    %392 = vmatprep.subr.mxu0 0.0
    %393 = vmatpush1.msra.mxu0 %v375
    %394 = vmatprep.subr.mxu0 0.0
    %395 = vmatpush1.msra.mxu0 %v376
    %396 = vmatprep.subr.mxu0 0.0
    %397 = vmatpush1.msra.mxu0 %v377
    %398 = vmatprep.subr.mxu0 0.0
    %399 = vmatpush1.msra.mxu0 0.0
    %400 = vmatprep.subr.mxu0 0.0
    %401 = vmatpush1.msra.mxu0 0.0
    %402 = vmatprep.subr.mxu0 0.0
    %403 = vmatpush1.msra.mxu0 0.0
    %404 = vmatprep.subr.mxu0 0.0
    %405 = vmatpush1.msra.mxu0 0.0
    %406 = vmatprep.subr.mxu0 0.0
    %407 = vmatpush1.msra.mxu0 0.0
    %408 = vmatprep.subr.mxu0 0.0
    %409 = vmatpush1.msra.mxu0 0.0
    %410 = vmatprep.subr.mxu0 0.0
    %411 = vmatpush1.msra.mxu0 0.0
    %412 = vmatprep.subr.mxu0 0.0
    %413 = vmatpush1.msra.mxu0 0.0
    %414 = vmatprep.subr.mxu0 0.0
    %415 = vmatpush1.msra.mxu0 0.0
    %416 = vmatprep.subr.mxu0 0.0
    %417 = vmatpush1.msra.mxu0 0.0
    %418 = vmatprep.subr.mxu0 0.0
    %419 = vmatpush1.msra.mxu0 0.0
    %420 = vmatprep.subr.mxu0 0.0
    %421 = vmatpush1.msra.mxu0 0.0
    %422 = vmatprep.subr.mxu0 0.0
    %423 = vmatpush1.msra.mxu0 0.0
    %424 = vmatprep.subr.mxu0 0.0
    %425 = vmatpush1.msra.mxu0 0.0
    %426 = vmatprep.subr.mxu0 0.0
    %427 = vmatpush1.msra.mxu0 0.0
    %428 = vmatprep.subr.mxu0 0.0
    %429 = vmatpush1.msra.mxu0 0.0
    %430 = vmatprep.subr.mxu0 0.0
    %431 = vmatpush1.msra.mxu0 0.0
    %432 = vmatprep.subr.mxu0 0.0
    %433 = vmatpush1.msra.mxu0 0.0
    %434 = vmatprep.subr.mxu0 0.0
    %435 = vmatpush1.msra.mxu0 0.0
    %436 = vmatprep.subr.mxu0 0.0
    %437 = vmatpush1.msra.mxu0 0.0
    %438 = vmatprep.subr.mxu0 0.0
    %439 = vmatpush1.msra.mxu0 0.0
    %440 = vmatprep.subr.mxu0 0.0
    %441 = vmatpush1.msra.mxu0 0.0
    %442 = vmatprep.subr.mxu0 0.0
    %443 = vmatpush1.msra.mxu0 0.0
    %444 = vmatprep.subr.mxu0 0.0
    %445 = vmatpush1.msra.mxu0 0.0
    %446 = vmatprep.subr.mxu0 0.0
    %447 = vmatpush1.msra.mxu0 0.0
    %448 = vmatprep.subr.mxu0 0.0
    %449 = vmatpush1.msra.mxu0 0.0
    %450 = vmatprep.subr.mxu0 0.0
    %451 = vmatpush1.msra.mxu0 0.0
    %452 = vmatprep.mubr.f32.mxu0 0.0
    %453 = vmatmul.mubr.f32.gmra.mrb[0].mxu0 %v386
    %v454 = vpop.f32.mrb[0].mxu0
    %v455 = vadd.f32 %v383, %v454
    %v456 = vpop.f32.mrb[0].mxu0
    %457 = vdwg.mxu0
    %458 = vst [vmem:[#allocation17] sm:$0xff] %v455
    // Predicated region
    $region74: #{tpu_custom_call.1} parent=1 // pred_check
      _
    $region75: #{tpu_custom_call.1} parent=1 // pred_check_branch
      %460 = sbr.rel (0) target = $region77
    $region76: #{tpu_custom_call.1} parent=1 // pred_region
      %s462 = ssub.s32 128, 128
      %463 = vsyncadd [#allocation4], %s462
      %s465 = sshll.u32 [#allocation17], 4
      %s466 = int_to_ptr.vmem [resolvable:$true] %s465
      %468 = dma.vmem_to_hbm [thread:$0]  %s466, 128, %s9, [#allocation4]
    $region77: #{tpu_custom_call.1} parent=1 // pred_fallthru
      _
    // Predicated region
    $region78: #{tpu_custom_call.1} parent=1 // pred_check
      _
    $region79: #{tpu_custom_call.1} parent=1 // pred_check_branch
      %470 = sbr.rel (0) target = $region81
    $region80: #{tpu_custom_call.1} parent=1 // pred_region
      %471 = dma.done [#allocation4], 128
    $region81: #{tpu_custom_call.1} parent=1 // pred_fallthru
      _
    %472 = vsyncpa [#allocation3], 1
    %473 = vsyncpa [#allocation6], 1
    %474 = vsyncpa [#allocation9], 1
    %475 = vsyncpa [#allocation12], 1
    %476 = vsyncpa [#allocation15], 1
    %477 = vsyncpa [#allocation4], 1

</llo_original>
